<compile_context>
chip_gen: v7x
topology: tpu7x:2x2x1
jax: 0.10.0
libtpu: 0.0.40
codegen_flags: <defaults>
</compile_context>

<pallas_src>
import jax
import jax.numpy as jnp
import numpy as np
from jax.experimental import pallas as pl
from jax.experimental.pallas import tpu as pltpu


def nvp_kernel(z_ref, phi_ref, w1z_ref, w1p_ref, b1_ref,
               w2_ref, b2_ref, w3_ref, b3_ref, out_ref):
    z_f32 = z_ref[...]                              # (TM, 8)  f32
    z_bf16 = z_f32.astype(jnp.bfloat16)             # (TM, 8)  bf16
    phi = phi_ref[...]                              # (TM, 256) bf16

    # fc1: cat(z1, phi) @ W1 + b1  ==  z @ W1z_pad + phi @ W1p + b1
    # (rows 4..7 of W1z_pad are zero, so z2 contributes nothing)
    h1 = (jnp.dot(z_bf16, w1z_ref[...], preferred_element_type=jnp.float32)
          + jnp.dot(phi, w1p_ref[...], preferred_element_type=jnp.float32)
          + b1_ref[...])
    h1 = jnp.maximum(h1, 0.0)                       # relu, f32

    # fc2
    h2 = jnp.dot(h1.astype(jnp.bfloat16), w2_ref[...],
                 preferred_element_type=jnp.float32) + b2_ref[...]
    h2 = jnp.maximum(h2, 0.0)                       # relu, f32

    # fc3 (N padded to 128 for lane-dense MXU output; cols 8..127 are zero)
    x3 = jnp.dot(h2.astype(jnp.bfloat16), w3_ref[...],
                 preferred_element_type=jnp.float32) + b3_ref[...]  # (TM, 128)

    z1 = z_f32[:, :4]
    z2 = z_f32[:, 4:]
    v = x3[:, :4]
    t = x3[:, 4:8]

    # z_p[:, :4] = z1 ; z_p[:, 4:] = z2 * exp(v) + t
    out_ref[:, :4] = z1
    out_ref[:, 4:] = z2 * jnp.exp(v) + t


def prepare_params(params):
    """One-time parameter prep: split/pad fc1, pad fc3, cast GEMM weights to bf16."""
    w1, b1, w2, b2, w3, b3 = params
    # fc1 weight (260, 256): rows 0..3 act on z1, rows 4..259 act on phi.
    w1z = jnp.zeros((8, 256), jnp.float32).at[:4, :].set(w1[:4, :])
    w1p = w1[4:, :]
    # fc3 padded to lane-dense N=128.
    w3p = jnp.zeros((256, 128), jnp.float32).at[:, :8].set(w3)
    b3p = jnp.zeros((1, 128), jnp.float32).at[:, :8].set(b3.reshape(1, -1))
    return (w1z.astype(jnp.bfloat16),
            w1p.astype(jnp.bfloat16),
            b1.reshape(1, -1).astype(jnp.float32),
            w2.astype(jnp.bfloat16),
            b2.reshape(1, -1).astype(jnp.float32),
            w3p.astype(jnp.bfloat16),
            b3p)


def nvp_forward(z, phi, prepped, tm=512):
    """z: (B, 8) f32, phi: (B, 256) f32 -> (B, 8) f32."""
    w1z, w1p, b1, w2, b2, w3p, b3p = prepped
    B = z.shape[0]
    TM = B if B < tm else tm
    grid = (pl.cdiv(B, TM),)

    phi_bf16 = phi.astype(jnp.bfloat16)

    def rows(width):
        return pl.BlockSpec((TM, width), lambda i: (i, 0))

    def resident(shape):
        return pl.BlockSpec(shape, lambda i: (0, 0))

    weight_bytes = 2 * (8 * 256 + 256 * 256 + 256 * 128) + 4 * (256 + 256 + 128)
    cost = pl.CostEstimate(
        flops=2 * B * ((8 + 256) * 256 + 256 * 256 + 256 * 128),
        transcendentals=4 * B,
        bytes_accessed=int(B * (8 * 4 + 256 * 2 + 8 * 4) + weight_bytes),
    )

    return pl.pallas_call(
        nvp_kernel,
        out_shape=jax.ShapeDtypeStruct((B, 8), jnp.float32),
        grid=grid,
        in_specs=[
            rows(8),                       # z        (TM, 8)    f32
            rows(256),                     # phi      (TM, 256)  bf16
            resident((8, 256)),            # w1z_pad             bf16
            resident((256, 256)),          # w1p                 bf16
            resident((1, 256)),            # b1                  f32
            resident((256, 256)),          # w2                  bf16
            resident((1, 256)),            # b2                  f32
            resident((256, 128)),          # w3_pad              bf16
            resident((1, 128)),            # b3_pad              f32
        ],
        out_specs=rows(8),
        compiler_params=pltpu.CompilerParams(
            dimension_semantics=("parallel",)),
        cost_estimate=cost,
    )(z, phi_bf16, w1z, w1p, b1, w2, b2, w3p, b3p)


def init_params(key):
    """Deterministic PyTorch-Linear-style init; weights stored as (in, out)."""
    def linear(key, fan_in, fan_out):
        k1, k2 = jax.random.split(key)
        bound = 1.0 / np.sqrt(fan_in)
        w = jax.random.uniform(k1, (fan_in, fan_out), jnp.float32, -bound, bound)
        b = jax.random.uniform(k2, (fan_out,), jnp.float32, -bound, bound)
        return w, b

    k1, k2, k3 = jax.random.split(key, 3)
    w1, b1 = linear(k1, 260, 256)
    w2, b2 = linear(k2, 256, 256)
    w3, b3 = linear(k3, 256, 8)
    return (w1, b1, w2, b2, w3, b3)


def nvp_reference_f32(z, phi, params):
    """Pure-JAX f32 reference mirroring the PyTorch forward."""
    w1, b1, w2, b2, w3, b3 = params
    z1, z2 = z[:, :4], z[:, 4:]
    x = jnp.concatenate([z1, phi], axis=1)
    x = jax.nn.relu(x @ w1 + b1)
    x = jax.nn.relu(x @ w2 + b2)
    x = x @ w3 + b3
    v, t = x[:, :4], x[:, 4:]
    return jnp.concatenate([z1, z2 * jnp.exp(v) + t], axis=1)


def nvp_reference_bf16(z, phi, prepped):
    """Reference that mirrors the kernel's bf16-operand / f32-accumulate math."""
    w1z, w1p, b1, w2, b2, w3p, b3p = prepped
    zb = z.astype(jnp.bfloat16)
    phib = phi.astype(jnp.bfloat16)
    h1 = jax.nn.relu(jnp.dot(zb, w1z, preferred_element_type=jnp.float32)
                     + jnp.dot(phib, w1p, preferred_element_type=jnp.float32)
                     + b1)
    h2 = jax.nn.relu(jnp.dot(h1.astype(jnp.bfloat16), w2,
                             preferred_element_type=jnp.float32) + b2)
    x3 = jnp.dot(h2.astype(jnp.bfloat16), w3p,
                 preferred_element_type=jnp.float32) + b3p
    v, t = x3[:, :4], x3[:, 4:8]
    return jnp.concatenate([z[:, :4], z[:, 4:] * jnp.exp(v) + t], axis=1)


if __name__ == "__main__":
    key = jax.random.PRNGKey(0)
    kp, kz, kphi = jax.random.split(key, 3)

    B = 64
    params = init_params(kp)
    prepped = prepare_params(params)
    z = jax.random.normal(kz, (B, 8), jnp.float32)
    phi = jax.random.normal(kphi, (B, 256), jnp.float32)

    # single-block path (B < tm -> grid of 1)
    out = jax.block_until_ready(nvp_forward(z, phi, prepped))
    # multi-step batch grid path (TM=16 -> grid of 4)
    out_grid = jax.block_until_ready(nvp_forward(z, phi, prepped, tm=16))

    ref_bf16 = nvp_reference_bf16(z, phi, prepped)
    ref_f32 = nvp_reference_f32(z, phi, params)

    np.testing.assert_allclose(np.asarray(out), np.asarray(ref_bf16),
                               rtol=2e-3, atol=2e-3)
    np.testing.assert_allclose(np.asarray(out_grid), np.asarray(ref_bf16),
                               rtol=2e-3, atol=2e-3)
    # loose check against the exact f32 semantics of the PyTorch module
    np.testing.assert_allclose(np.asarray(out), np.asarray(ref_f32),
                               rtol=5e-2, atol=5e-2)
    print("KERNEL_OK")
</pallas_src>

<mosaic_0001>
module attributes {stable_mosaic.version = 11 : i64} {
  func.func @nvp_kernel(%arg0: i32, %arg1: memref<64x8xf32, #tpu.memory_space<vmem>>, %arg2: memref<64x256xbf16, #tpu.memory_space<vmem>>, %arg3: memref<8x256xbf16, #tpu.memory_space<vmem>>, %arg4: memref<256x256xbf16, #tpu.memory_space<vmem>>, %arg5: memref<1x256xf32, #tpu.memory_space<vmem>>, %arg6: memref<256x256xbf16, #tpu.memory_space<vmem>>, %arg7: memref<1x256xf32, #tpu.memory_space<vmem>>, %arg8: memref<256x128xbf16, #tpu.memory_space<vmem>>, %arg9: memref<1x128xf32, #tpu.memory_space<vmem>>, %arg10: memref<64x8xf32, #tpu.memory_space<vmem>>) attributes {dimension_semantics = [#tpu.dimension_semantics<parallel>], iteration_bounds = array<i64: 1>, scalar_prefetch = 0 : i64, scratch_operands = 0 : i64, tpu.core_type = #tpu.core_type<tc>, window_params = [{transform_indices = @transform_0, window_bounds = array<i64: 64, 8>}, {transform_indices = @transform_1, window_bounds = array<i64: 64, 256>}, {pipeline_mode = #tpu.pipeline_mode<synchronous>, transform_indices = @transform_2, window_bounds = array<i64: 8, 256>}, {pipeline_mode = #tpu.pipeline_mode<synchronous>, transform_indices = @transform_3, window_bounds = array<i64: 256, 256>}, {pipeline_mode = #tpu.pipeline_mode<synchronous>, transform_indices = @transform_4, window_bounds = array<i64: 1, 256>}, {pipeline_mode = #tpu.pipeline_mode<synchronous>, transform_indices = @transform_5, window_bounds = array<i64: 256, 256>}, {pipeline_mode = #tpu.pipeline_mode<synchronous>, transform_indices = @transform_6, window_bounds = array<i64: 1, 256>}, {pipeline_mode = #tpu.pipeline_mode<synchronous>, transform_indices = @transform_7, window_bounds = array<i64: 256, 128>}, {pipeline_mode = #tpu.pipeline_mode<synchronous>, transform_indices = @transform_8, window_bounds = array<i64: 1, 128>}, {transform_indices = @transform_9, window_bounds = array<i64: 64, 8>}]} {
    %c0 = arith.constant 0 : index
    %c0_0 = arith.constant 0 : index
    %0 = vector.load %arg1[%c0, %c0_0] : memref<64x8xf32, #tpu.memory_space<vmem>>, vector<64x8xf32>
    %1 = arith.truncf %0 : vector<64x8xf32> to vector<64x8xbf16>
    %c0_1 = arith.constant 0 : index
    %c0_2 = arith.constant 0 : index
    %2 = vector.load %arg2[%c0_1, %c0_2] : memref<64x256xbf16, #tpu.memory_space<vmem>>, vector<64x256xbf16>
    %c0_3 = arith.constant 0 : index
    %c0_4 = arith.constant 0 : index
    %3 = vector.load %arg3[%c0_3, %c0_4] : memref<8x256xbf16, #tpu.memory_space<vmem>>, vector<8x256xbf16>
    %cst = arith.constant dense<0.000000e+00> : vector<64x256xf32>
    %4 = tpu.matmul %1, %3, %cst {dimension_numbers = #tpu.dot_dimension_numbers<[1], [0], [0], [1], [0, 0, 1, 1], [], []>} : vector<64x8xbf16>, vector<8x256xbf16>, vector<64x256xf32> -> vector<64x256xf32>
    %c0_5 = arith.constant 0 : index
    %c0_6 = arith.constant 0 : index
    %5 = vector.load %arg4[%c0_5, %c0_6] : memref<256x256xbf16, #tpu.memory_space<vmem>>, vector<256x256xbf16>
    %cst_7 = arith.constant dense<0.000000e+00> : vector<64x256xf32>
    %6 = tpu.matmul %2, %5, %cst_7 {dimension_numbers = #tpu.dot_dimension_numbers<[1], [0], [0], [1], [0, 0, 1, 1], [], []>} : vector<64x256xbf16>, vector<256x256xbf16>, vector<64x256xf32> -> vector<64x256xf32>
    %7 = arith.addf %4, %6 : vector<64x256xf32>
    %c0_8 = arith.constant 0 : index
    %c0_9 = arith.constant 0 : index
    %8 = vector.load %arg5[%c0_8, %c0_9] : memref<1x256xf32, #tpu.memory_space<vmem>>, vector<1x256xf32>
    %9 = vector.broadcast %8 : vector<1x256xf32> to vector<64x256xf32>
    %10 = arith.addf %7, %9 : vector<64x256xf32>
    %cst_10 = arith.constant 0.000000e+00 : f32
    %11 = vector.broadcast %cst_10 : f32 to vector<64x256xf32>
    %12 = arith.maximumf %10, %11 : vector<64x256xf32>
    %13 = arith.truncf %12 : vector<64x256xf32> to vector<64x256xbf16>
    %c0_11 = arith.constant 0 : index
    %c0_12 = arith.constant 0 : index
    %14 = vector.load %arg6[%c0_11, %c0_12] : memref<256x256xbf16, #tpu.memory_space<vmem>>, vector<256x256xbf16>
    %cst_13 = arith.constant dense<0.000000e+00> : vector<64x256xf32>
    %15 = tpu.matmul %13, %14, %cst_13 {dimension_numbers = #tpu.dot_dimension_numbers<[1], [0], [0], [1], [0, 0, 1, 1], [], []>} : vector<64x256xbf16>, vector<256x256xbf16>, vector<64x256xf32> -> vector<64x256xf32>
    %c0_14 = arith.constant 0 : index
    %c0_15 = arith.constant 0 : index
    %16 = vector.load %arg7[%c0_14, %c0_15] : memref<1x256xf32, #tpu.memory_space<vmem>>, vector<1x256xf32>
    %17 = vector.broadcast %16 : vector<1x256xf32> to vector<64x256xf32>
    %18 = arith.addf %15, %17 : vector<64x256xf32>
    %cst_16 = arith.constant 0.000000e+00 : f32
    %19 = vector.broadcast %cst_16 : f32 to vector<64x256xf32>
    %20 = arith.maximumf %18, %19 : vector<64x256xf32>
    %21 = arith.truncf %20 : vector<64x256xf32> to vector<64x256xbf16>
    %c0_17 = arith.constant 0 : index
    %c0_18 = arith.constant 0 : index
    %22 = vector.load %arg8[%c0_17, %c0_18] : memref<256x128xbf16, #tpu.memory_space<vmem>>, vector<256x128xbf16>
    %cst_19 = arith.constant dense<0.000000e+00> : vector<64x128xf32>
    %23 = tpu.matmul %21, %22, %cst_19 {dimension_numbers = #tpu.dot_dimension_numbers<[1], [0], [0], [1], [0, 0, 1, 1], [], []>} : vector<64x256xbf16>, vector<256x128xbf16>, vector<64x128xf32> -> vector<64x128xf32>
    %c0_20 = arith.constant 0 : index
    %c0_21 = arith.constant 0 : index
    %24 = vector.load %arg9[%c0_20, %c0_21] : memref<1x128xf32, #tpu.memory_space<vmem>>, vector<1x128xf32>
    %25 = vector.broadcast %24 : vector<1x128xf32> to vector<64x128xf32>
    %26 = arith.addf %23, %25 : vector<64x128xf32>
    %27 = vector.extract_strided_slice %0 {offsets = [0, 0], sizes = [64, 4], strides = [1, 1]} : vector<64x8xf32> to vector<64x4xf32>
    %28 = vector.extract_strided_slice %0 {offsets = [0, 4], sizes = [64, 4], strides = [1, 1]} : vector<64x8xf32> to vector<64x4xf32>
    %29 = vector.extract_strided_slice %26 {offsets = [0, 0], sizes = [64, 4], strides = [1, 1]} : vector<64x128xf32> to vector<64x4xf32>
    %30 = vector.extract_strided_slice %26 {offsets = [0, 4], sizes = [64, 4], strides = [1, 1]} : vector<64x128xf32> to vector<64x4xf32>
    %c0_22 = arith.constant 0 : index
    %c0_23 = arith.constant 0 : index
    %31 = vector.load %arg10[%c0_22, %c0_23] : memref<64x8xf32, #tpu.memory_space<vmem>>, vector<64x4xf32>
    tpu.vector_store %arg10[%c0_22, %c0_23], %27 {strides = array<i32>} : memref<64x8xf32, #tpu.memory_space<vmem>>, vector<64x4xf32>,
    %32 = math.exp %29 : vector<64x4xf32>
    %33 = arith.mulf %28, %32 : vector<64x4xf32>
    %34 = arith.addf %33, %30 : vector<64x4xf32>
    %c0_24 = arith.constant 0 : index
    %c4 = arith.constant 4 : index
    %35 = vector.load %arg10[%c0_24, %c4] : memref<64x8xf32, #tpu.memory_space<vmem>>, vector<64x4xf32>
    tpu.vector_store %arg10[%c0_24, %c4], %34 {strides = array<i32>} : memref<64x8xf32, #tpu.memory_space<vmem>>, vector<64x4xf32>,
    return
  }
  func.func @transform_0(%arg0: i32) -> (i32, i32) {
    %c0_i32 = arith.constant 0 : i32
    %c0_i32_0 = arith.constant 0 : i32
    return %arg0, %c0_i32 : i32, i32
  }
  func.func @transform_1(%arg0: i32) -> (i32, i32) {
    %c0_i32 = arith.constant 0 : i32
    %c0_i32_0 = arith.constant 0 : i32
    return %arg0, %c0_i32 : i32, i32
  }
  func.func @transform_2(%arg0: i32) -> (i32, i32) {
    %c0_i32 = arith.constant 0 : i32
    %c0_i32_0 = arith.constant 0 : i32
    %c0_i32_1 = arith.constant 0 : i32
    return %c0_i32, %c0_i32_0 : i32, i32
  }
  func.func @transform_3(%arg0: i32) -> (i32, i32) {
    %c0_i32 = arith.constant 0 : i32
    %c0_i32_0 = arith.constant 0 : i32
    %c0_i32_1 = arith.constant 0 : i32
    return %c0_i32, %c0_i32_0 : i32, i32
  }
  func.func @transform_4(%arg0: i32) -> (i32, i32) {
    %c0_i32 = arith.constant 0 : i32
    %c0_i32_0 = arith.constant 0 : i32
    %c0_i32_1 = arith.constant 0 : i32
    return %c0_i32, %c0_i32_0 : i32, i32
  }
  func.func @transform_5(%arg0: i32) -> (i32, i32) {
    %c0_i32 = arith.constant 0 : i32
    %c0_i32_0 = arith.constant 0 : i32
    %c0_i32_1 = arith.constant 0 : i32
    return %c0_i32, %c0_i32_0 : i32, i32
  }
  func.func @transform_6(%arg0: i32) -> (i32, i32) {
    %c0_i32 = arith.constant 0 : i32
    %c0_i32_0 = arith.constant 0 : i32
    %c0_i32_1 = arith.constant 0 : i32
    return %c0_i32, %c0_i32_0 : i32, i32
  }
  func.func @transform_7(%arg0: i32) -> (i32, i32) {
    %c0_i32 = arith.constant 0 : i32
    %c0_i32_0 = arith.constant 0 : i32
    %c0_i32_1 = arith.constant 0 : i32
    return %c0_i32, %c0_i32_0 : i32, i32
  }
  func.func @transform_8(%arg0: i32) -> (i32, i32) {
    %c0_i32 = arith.constant 0 : i32
    %c0_i32_0 = arith.constant 0 : i32
    %c0_i32_1 = arith.constant 0 : i32
    return %c0_i32, %c0_i32_0 : i32, i32
  }
  func.func @transform_9(%arg0: i32) -> (i32, i32) {
    %c0_i32 = arith.constant 0 : i32
    %c0_i32_0 = arith.constant 0 : i32
    return %arg0, %c0_i32 : i32, i32
  }
}

</mosaic_0001>

<llo_original>
// kernel: tpu_custom_call.1
$region0: #{tpu_custom_call.1}
  #allocation0 [shape = 'u32[]', space=smem, size = 0x4, offset = 0x4, fixed_abs, tag = 'smem constant byte address 0x4 - core index']
  #allocation1 [shape = 'u32[144,128]{1,0:T(1,128)}', space=vmem, size = 0x12000, scoped, tag = 'internal scratch']
  %s0 = inlined_call_operand.vmem [shape: f32[64,8], index: 0, kind: input, shape index: {}]
  %s1 = inlined_call_operand.vmem [shape: bf16[64,256], index: 1, kind: input, shape index: {}]
  %s2 = inlined_call_operand.vmem [shape: bf16[8,256], index: 2, kind: input, shape index: {}]
  %s3 = inlined_call_operand.hbm [shape: bf16[256,256], index: 3, kind: input, shape index: {}]
  %s4 = inlined_call_operand.vmem [shape: f32[1,256], index: 4, kind: input, shape index: {}]
  %s5 = inlined_call_operand.hbm [shape: bf16[256,256], index: 5, kind: input, shape index: {}]
  %s6 = inlined_call_operand.vmem [shape: f32[1,256], index: 6, kind: input, shape index: {}]
  %s7 = inlined_call_operand.hbm [shape: bf16[256,128], index: 7, kind: input, shape index: {}]
  %s8 = inlined_call_operand.vmem [shape: f32[1,128], index: 8, kind: input, shape index: {}]
  %s9 = inlined_call_operand.vmem [shape: f32[64,8], index: 9, kind: output, shape index: {}]
  %s10 = sld [smem:[#allocation0]]
  $region58: #{tpu_custom_call.1} parent=0
    _
  %s12 = ssub.s32 1, %s10
  %s13 = scalar_select 0, %s12, %s10
  $region1: #{tpu_custom_call.1} parent=0
    #allocation2 [shape = 'u8[131072]{0}', space=vmem, size = 0x20000, scoped, tag = 'input window, operand 3, single buffered']
    #allocation3 [shape = 's32[1]{0}', space=sflag, size = 0x4, scoped, tag = 'scoped memory for tpu_custom_call.1']
    #allocation4 [shape = 'u8[131072]{0}', space=vmem, size = 0x20000, scoped, tag = 'input window, operand 5, single buffered']
    #allocation5 [shape = 's32[1]{0}', space=sflag, size = 0x4, scoped, tag = 'scoped memory for tpu_custom_call.1']
    #allocation6 [shape = 'u8[65536]{0}', space=vmem, size = 0x10000, scoped, tag = 'input window, operand 7, single buffered']
    %14 = vsyncpa [#allocation3], 0
    %15 = vsyncpa [#allocation5], 0
    // Predicated region
    $region2: #{tpu_custom_call.1} parent=1 // pred_check
      _
    $region3: #{tpu_custom_call.1} parent=1 // pred_check_branch
      %17 = sbr.rel (0) target = $region5
    $region4: #{tpu_custom_call.1} parent=1 // pred_region
      _
    $region5: #{tpu_custom_call.1} parent=1 // pred_fallthru
      _
    // Predicated region
    $region6: #{tpu_custom_call.1} parent=1 // pred_check
      _
    $region7: #{tpu_custom_call.1} parent=1 // pred_check_branch
      %19 = sbr.rel (0) target = $region9
    $region8: #{tpu_custom_call.1} parent=1 // pred_region
      _
    $region9: #{tpu_custom_call.1} parent=1 // pred_fallthru
      _
    // Predicated region
    $region10: #{tpu_custom_call.1} parent=1 // pred_check
      _
    $region11: #{tpu_custom_call.1} parent=1 // pred_check_branch
      %21 = sbr.rel (0) target = $region13
    $region12: #{tpu_custom_call.1} parent=1 // pred_region
      _
    $region13: #{tpu_custom_call.1} parent=1 // pred_fallthru
      _
    // Predicated region
    $region14: #{tpu_custom_call.1} parent=1 // pred_check
      _
    $region15: #{tpu_custom_call.1} parent=1 // pred_check_branch
      %23 = sbr.rel (0) target = $region17
    $region16: #{tpu_custom_call.1} parent=1 // pred_region
      %s25 = ssub.s32 4096, 4096
      %26 = vsyncadd [#allocation3], %s25
      %s27 = sshll.u32 [#allocation2], 4
      %s28 = int_to_ptr.vmem [resolvable:$true] %s27
      %33 = dma.hbm_to_vmem [thread:$0]  %s3, 4096, %s28, [#allocation3], 128, 128, 8
    $region17: #{tpu_custom_call.1} parent=1 // pred_fallthru
      _
    // Predicated region
    $region18: #{tpu_custom_call.1} parent=1 // pred_check
      _
    $region19: #{tpu_custom_call.1} parent=1 // pred_check_branch
      %35 = sbr.rel (0) target = $region21
    $region20: #{tpu_custom_call.1} parent=1 // pred_region
      _
    $region21: #{tpu_custom_call.1} parent=1 // pred_fallthru
      _
    // Predicated region
    $region22: #{tpu_custom_call.1} parent=1 // pred_check
      _
    $region23: #{tpu_custom_call.1} parent=1 // pred_check_branch
      %37 = sbr.rel (0) target = $region25
    $region24: #{tpu_custom_call.1} parent=1 // pred_region
      %s39 = ssub.s32 4096, 4096
      %40 = vsyncadd [#allocation5], %s39
      %s41 = sshll.u32 [#allocation4], 4
      %s42 = int_to_ptr.vmem [resolvable:$true] %s41
      %47 = dma.hbm_to_vmem [thread:$0]  %s5, 4096, %s42, [#allocation5], 128, 128, 8
    $region25: #{tpu_custom_call.1} parent=1 // pred_fallthru
      _
    // Predicated region
    $region26: #{tpu_custom_call.1} parent=1 // pred_check
      _
    $region27: #{tpu_custom_call.1} parent=1 // pred_check_branch
      %49 = sbr.rel (0) target = $region29
    $region28: #{tpu_custom_call.1} parent=1 // pred_region
      _
    $region29: #{tpu_custom_call.1} parent=1 // pred_fallthru
      _
    // Predicated region
    $region30: #{tpu_custom_call.1} parent=1 // pred_check
      _
    $region31: #{tpu_custom_call.1} parent=1 // pred_check_branch
      %51 = sbr.rel (0) target = $region33
    $region32: #{tpu_custom_call.1} parent=1 // pred_region
      %s53 = ssub.s32 2048, 2048
      %54 = vsyncadd [#allocation5], %s53
      %s55 = sshll.u32 [#allocation6], 4
      %s56 = int_to_ptr.vmem [resolvable:$true] %s55
      %61 = dma.hbm_to_vmem [thread:$0]  %s7, 2048, %s56, [#allocation5], 64, 64, 4
    $region33: #{tpu_custom_call.1} parent=1 // pred_fallthru
      _
    // Predicated region
    $region34: #{tpu_custom_call.1} parent=1 // pred_check
      _
    $region35: #{tpu_custom_call.1} parent=1 // pred_check_branch
      %63 = sbr.rel (0) target = $region37
    $region36: #{tpu_custom_call.1} parent=1 // pred_region
      _
    $region37: #{tpu_custom_call.1} parent=1 // pred_fallthru
      _
    // Predicated region
    $region38: #{tpu_custom_call.1} parent=1 // pred_check
      _
    $region39: #{tpu_custom_call.1} parent=1 // pred_check_branch
      %65 = sbr.rel (0) target = $region41
    $region40: #{tpu_custom_call.1} parent=1 // pred_region
      %66 = dma.done [#allocation3], 4096
    $region41: #{tpu_custom_call.1} parent=1 // pred_fallthru
      _
    // Predicated region
    $region42: #{tpu_custom_call.1} parent=1 // pred_check
      _
    $region43: #{tpu_custom_call.1} parent=1 // pred_check_branch
      %68 = sbr.rel (0) target = $region45
    $region44: #{tpu_custom_call.1} parent=1 // pred_region
      %69 = dma.done [#allocation5], 4096
    $region45: #{tpu_custom_call.1} parent=1 // pred_fallthru
      _
    // Predicated region
    $region46: #{tpu_custom_call.1} parent=1 // pred_check
      _
    $region47: #{tpu_custom_call.1} parent=1 // pred_check_branch
      %71 = sbr.rel (0) target = $region49
    $region48: #{tpu_custom_call.1} parent=1 // pred_region
      %72 = dma.done [#allocation5], 2048
    $region49: #{tpu_custom_call.1} parent=1 // pred_fallthru
      _
    %v74 = vld [vmem:[%s0] sm:$0xff]
    %v75 = vld [vmem:[%s0 + $0x8] sm:$0xff]
    %v76 = vld [vmem:[%s0 + $0x10] sm:$0xff]
    %v77 = vld [vmem:[%s0 + $0x18] sm:$0xff]
    %v78 = vld [vmem:[%s0 + $0x20] sm:$0xff]
    %v79 = vld [vmem:[%s0 + $0x28] sm:$0xff]
    %v80 = vld [vmem:[%s0 + $0x30] sm:$0xff]
    %v81 = vld [vmem:[%s0 + $0x38] sm:$0xff]
    %v82 = vpack.c.bf16 %v75, %v74
    %v83 = vpack.c.bf16 %v77, %v76
    %v84 = vpack.c.bf16 %v79, %v78
    %v85 = vpack.c.bf16 %v81, %v80
    %v86 = vld [vmem:[%s1] sm:$0xff]
    %v87 = vld [vmem:[%s1 + $0x8] sm:$0xff]
    %v88 = vld [vmem:[%s1 + $0x10] sm:$0xff]
    %v89 = vld [vmem:[%s1 + $0x18] sm:$0xff]
    %v90 = vld [vmem:[%s1 + $0x20] sm:$0xff]
    %v91 = vld [vmem:[%s1 + $0x28] sm:$0xff]
    %v92 = vld [vmem:[%s1 + $0x30] sm:$0xff]
    %v93 = vld [vmem:[%s1 + $0x38] sm:$0xff]
    %v94 = vld [vmem:[%s2] sm:$0xff]
    %v95 = vld [vmem:[#allocation2] sm:$0xff]
    %v96 = vld [vmem:[#allocation2 + $0x8] sm:$0xff]
    %v97 = vld [vmem:[#allocation2 + $0x10] sm:$0xff]
    %v98 = vld [vmem:[#allocation2 + $0x18] sm:$0xff]
    %v99 = vld [vmem:[#allocation2 + $0x20] sm:$0xff]
    %v100 = vld [vmem:[#allocation2 + $0x28] sm:$0xff]
    %v101 = vld [vmem:[#allocation2 + $0x30] sm:$0xff]
    %v102 = vld [vmem:[#allocation2 + $0x38] sm:$0xff]
    %v103 = vld [vmem:[#allocation2 + $0x40] sm:$0xff]
    %v104 = vld [vmem:[#allocation2 + $0x48] sm:$0xff]
    %v105 = vld [vmem:[#allocation2 + $0x50] sm:$0xff]
    %v106 = vld [vmem:[#allocation2 + $0x58] sm:$0xff]
    %v107 = vld [vmem:[#allocation2 + $0x60] sm:$0xff]
    %v108 = vld [vmem:[#allocation2 + $0x68] sm:$0xff]
    %v109 = vld [vmem:[#allocation2 + $0x70] sm:$0xff]
    %v110 = vld [vmem:[#allocation2 + $0x78] sm:$0xff]
    %v111 = vld [vmem:[#allocation2 + $0x80] sm:$0xff]
    %v112 = vld [vmem:[#allocation2 + $0x88] sm:$0xff]
    %v113 = vld [vmem:[#allocation2 + $0x90] sm:$0xff]
    %v114 = vld [vmem:[#allocation2 + $0x98] sm:$0xff]
    %v115 = vld [vmem:[#allocation2 + $0xa0] sm:$0xff]
    %v116 = vld [vmem:[#allocation2 + $0xa8] sm:$0xff]
    %v117 = vld [vmem:[#allocation2 + $0xb0] sm:$0xff]
    %v118 = vld [vmem:[#allocation2 + $0xb8] sm:$0xff]
    %v119 = vld [vmem:[#allocation2 + $0xc0] sm:$0xff]
    %v120 = vld [vmem:[#allocation2 + $0xc8] sm:$0xff]
    %v121 = vld [vmem:[#allocation2 + $0xd0] sm:$0xff]
    %v122 = vld [vmem:[#allocation2 + $0xd8] sm:$0xff]
    %v123 = vld [vmem:[#allocation2 + $0xe0] sm:$0xff]
    %v124 = vld [vmem:[#allocation2 + $0xe8] sm:$0xff]
    %v125 = vld [vmem:[#allocation2 + $0xf0] sm:$0xff]
    %v126 = vld [vmem:[#allocation2 + $0xf8] sm:$0xff]
    %v135 = vunpack.c.l.b16 %v86
    %v136 = vunpack.c.h.b16 %v86
    %v137 = vunpack.c.l.b16 %v87
    %v138 = vunpack.c.h.b16 %v87
    %v139 = vunpack.c.l.b16 %v88
    %v140 = vunpack.c.h.b16 %v88
    %v141 = vunpack.c.l.b16 %v89
    %v142 = vunpack.c.h.b16 %v89
    %v143 = vunpack.c.l.b16 %v90
    %v144 = vunpack.c.h.b16 %v90
    %v145 = vunpack.c.l.b16 %v91
    %v146 = vunpack.c.h.b16 %v91
    %v147 = vunpack.c.l.b16 %v92
    %v148 = vunpack.c.h.b16 %v92
    %v149 = vunpack.c.l.b16 %v93
    %v150 = vunpack.c.h.b16 %v93
    %v151 = vpack.c.b16 %v137, %v135
    %v152 = vpack.c.b16 %v138, %v136
    %v153 = vpack.c.b16 %v141, %v139
    %v154 = vpack.c.b16 %v142, %v140
    %v155 = vpack.c.b16 %v145, %v143
    %v156 = vpack.c.b16 %v146, %v144
    %v157 = vpack.c.b16 %v149, %v147
    %v158 = vpack.c.b16 %v150, %v148
    %v199 = vunpack.c.l.b16 %v95
    %v200 = vunpack.c.h.b16 %v95
    %v201 = vunpack.c.l.b16 %v96
    %v202 = vunpack.c.h.b16 %v96
    %v203 = vunpack.c.l.b16 %v97
    %v204 = vunpack.c.h.b16 %v97
    %v205 = vunpack.c.l.b16 %v98
    %v206 = vunpack.c.h.b16 %v98
    %v207 = vunpack.c.l.b16 %v99
    %v208 = vunpack.c.h.b16 %v99
    %v209 = vunpack.c.l.b16 %v100
    %v210 = vunpack.c.h.b16 %v100
    %v211 = vunpack.c.l.b16 %v101
    %v212 = vunpack.c.h.b16 %v101
    %v213 = vunpack.c.l.b16 %v102
    %v214 = vunpack.c.h.b16 %v102
    %v215 = vunpack.c.l.b16 %v103
    %v216 = vunpack.c.h.b16 %v103
    %v217 = vunpack.c.l.b16 %v104
    %v218 = vunpack.c.h.b16 %v104
    %v219 = vunpack.c.l.b16 %v105
    %v220 = vunpack.c.h.b16 %v105
    %v221 = vunpack.c.l.b16 %v106
    %v222 = vunpack.c.h.b16 %v106
    %v223 = vunpack.c.l.b16 %v107
    %v224 = vunpack.c.h.b16 %v107
    %v225 = vunpack.c.l.b16 %v108
    %v226 = vunpack.c.h.b16 %v108
    %v227 = vunpack.c.l.b16 %v109
    %v228 = vunpack.c.h.b16 %v109
    %v229 = vunpack.c.l.b16 %v110
    %v230 = vunpack.c.h.b16 %v110
    %v231 = vunpack.c.l.b16 %v111
    %v232 = vunpack.c.h.b16 %v111
    %v233 = vunpack.c.l.b16 %v112
    %v234 = vunpack.c.h.b16 %v112
    %v235 = vunpack.c.l.b16 %v113
    %v236 = vunpack.c.h.b16 %v113
    %v237 = vunpack.c.l.b16 %v114
    %v238 = vunpack.c.h.b16 %v114
    %v239 = vunpack.c.l.b16 %v115
    %v240 = vunpack.c.h.b16 %v115
    %v241 = vunpack.c.l.b16 %v116
    %v242 = vunpack.c.h.b16 %v116
    %v243 = vunpack.c.l.b16 %v117
    %v244 = vunpack.c.h.b16 %v117
    %v245 = vunpack.c.l.b16 %v118
    %v246 = vunpack.c.h.b16 %v118
    %v247 = vunpack.c.l.b16 %v119
    %v248 = vunpack.c.h.b16 %v119
    %v249 = vunpack.c.l.b16 %v120
    %v250 = vunpack.c.h.b16 %v120
    %v251 = vunpack.c.l.b16 %v121
    %v252 = vunpack.c.h.b16 %v121
    %v253 = vunpack.c.l.b16 %v122
    %v254 = vunpack.c.h.b16 %v122
    %v255 = vunpack.c.l.b16 %v123
    %v256 = vunpack.c.h.b16 %v123
    %v257 = vunpack.c.l.b16 %v124
    %v258 = vunpack.c.h.b16 %v124
    %v259 = vunpack.c.l.b16 %v125
    %v260 = vunpack.c.h.b16 %v125
    %v261 = vunpack.c.l.b16 %v126
    %v262 = vunpack.c.h.b16 %v126
    %v263 = vpack.c.b16 %v201, %v199
    %v264 = vpack.c.b16 %v202, %v200
    %v265 = vpack.c.b16 %v205, %v203
    %v266 = vpack.c.b16 %v206, %v204
    %v267 = vpack.c.b16 %v209, %v207
    %v268 = vpack.c.b16 %v210, %v208
    %v269 = vpack.c.b16 %v213, %v211
    %v270 = vpack.c.b16 %v214, %v212
    %v271 = vpack.c.b16 %v217, %v215
    %v272 = vpack.c.b16 %v218, %v216
    %v273 = vpack.c.b16 %v221, %v219
    %v274 = vpack.c.b16 %v222, %v220
    %v275 = vpack.c.b16 %v225, %v223
    %v276 = vpack.c.b16 %v226, %v224
    %v277 = vpack.c.b16 %v229, %v227
    %v278 = vpack.c.b16 %v230, %v228
    %v279 = vpack.c.b16 %v233, %v231
    %v280 = vpack.c.b16 %v234, %v232
    %v281 = vpack.c.b16 %v237, %v235
    %v282 = vpack.c.b16 %v238, %v236
    %v283 = vpack.c.b16 %v241, %v239
    %v284 = vpack.c.b16 %v242, %v240
    %v285 = vpack.c.b16 %v245, %v243
    %v286 = vpack.c.b16 %v246, %v244
    %v287 = vpack.c.b16 %v249, %v247
    %v288 = vpack.c.b16 %v250, %v248
    %v289 = vpack.c.b16 %v253, %v251
    %v290 = vpack.c.b16 %v254, %v252
    %v291 = vpack.c.b16 %v257, %v255
    %v292 = vpack.c.b16 %v258, %v256
    %v293 = vpack.c.b16 %v261, %v259
    %v294 = vpack.c.b16 %v262, %v260
    %327 = vmatprep.subr.bf16.mxu0 %v264
    %328 = vmatpush1.bf16.msra.mxu0 %v263
    %329 = vmatprep.subr.bf16.mxu0 %v266
    %330 = vmatpush1.bf16.msra.mxu0 %v265
    %331 = vmatprep.subr.bf16.mxu0 %v268
    %332 = vmatpush1.bf16.msra.mxu0 %v267
    %333 = vmatprep.subr.bf16.mxu0 %v270
    %334 = vmatpush1.bf16.msra.mxu0 %v269
    %335 = vmatprep.subr.bf16.mxu0 %v272
    %336 = vmatpush1.bf16.msra.mxu0 %v271
    %337 = vmatprep.subr.bf16.mxu0 %v274
    %338 = vmatpush1.bf16.msra.mxu0 %v273
    %339 = vmatprep.subr.bf16.mxu0 %v276
    %340 = vmatpush1.bf16.msra.mxu0 %v275
    %341 = vmatprep.subr.bf16.mxu0 %v278
    %342 = vmatpush1.bf16.msra.mxu0 %v277
    %343 = vmatprep.subr.bf16.mxu0 %v280
    %344 = vmatpush1.bf16.msra.mxu0 %v279
    %345 = vmatprep.subr.bf16.mxu0 %v282
    %346 = vmatpush1.bf16.msra.mxu0 %v281
    %347 = vmatprep.subr.bf16.mxu0 %v284
    %348 = vmatpush1.bf16.msra.mxu0 %v283
    %349 = vmatprep.subr.bf16.mxu0 %v286
    %350 = vmatpush1.bf16.msra.mxu0 %v285
    %351 = vmatprep.subr.bf16.mxu0 %v288
    %352 = vmatpush1.bf16.msra.mxu0 %v287
    %353 = vmatprep.subr.bf16.mxu0 %v290
    %354 = vmatpush1.bf16.msra.mxu0 %v289
    %355 = vmatprep.subr.bf16.mxu0 %v292
    %356 = vmatpush1.bf16.msra.mxu0 %v291
    %357 = vmatprep.subr.bf16.mxu0 %v294
    %358 = vmatpush1.bf16.msra.mxu0 %v293
    %359 = vmatprep.mubr.bf16.mxu0 %v152
    %360 = vmatmul.mubr.bf16.gmra.mrb[0].mxu0 %v151
    %v361 = vpop.f32.mrb[0].mxu0
    %v362 = vadd.f32 0.0, %v361
    %v363 = vpop.f32.mrb[0].mxu0
    %v364 = vadd.f32 0.0, %v363
    %v365 = vpop.f32.mrb[0].mxu0
    %v366 = vadd.f32 0.0, %v365
    %v367 = vpop.f32.mrb[0].mxu0
    %v368 = vadd.f32 0.0, %v367
    %369 = vmatprep.mubr.bf16.mxu0 %v154
    %370 = vmatmul.mubr.bf16.gmra.mrb[0].mxu0 %v153
    %v371 = vpop.f32.mrb[0].mxu0
    %v372 = vadd.f32 0.0, %v371
    %v373 = vpop.f32.mrb[0].mxu0
    %v374 = vadd.f32 0.0, %v373
    %v375 = vpop.f32.mrb[0].mxu0
    %v376 = vadd.f32 0.0, %v375
    %v377 = vpop.f32.mrb[0].mxu0
    %v378 = vadd.f32 0.0, %v377
    %379 = vmatprep.mubr.bf16.mxu0 %v156
    %380 = vmatmul.mubr.bf16.gmra.mrb[0].mxu0 %v155
    %v381 = vpop.f32.mrb[0].mxu0
    %v382 = vadd.f32 0.0, %v381
    %v383 = vpop.f32.mrb[0].mxu0
    %v384 = vadd.f32 0.0, %v383
    %v385 = vpop.f32.mrb[0].mxu0
    %v386 = vadd.f32 0.0, %v385
    %v387 = vpop.f32.mrb[0].mxu0
    %v388 = vadd.f32 0.0, %v387
    %389 = vmatprep.mubr.bf16.mxu0 %v158
    %390 = vmatmul.mubr.bf16.gmra.mrb[0].mxu0 %v157
    %v391 = vpop.f32.mrb[0].mxu0
    %v392 = vadd.f32 0.0, %v391
    %v393 = vpop.f32.mrb[0].mxu0
    %v394 = vadd.f32 0.0, %v393
    %v395 = vpop.f32.mrb[0].mxu0
    %v396 = vadd.f32 0.0, %v395
    %v397 = vpop.f32.mrb[0].mxu0
    %v398 = vadd.f32 0.0, %v397
    %399 = vdwg.mxu0
    %v401 = vunpack.c.l.b16 %v94
    %v402 = vunpack.c.h.b16 %v94
    %v403 = vpack.c.b16 %v401, %v401
    %v404 = vpack.c.b16 %v402, %v402
    %vm405 = vcmask 64512
    %v407 = vsel %vm405, %v82, 0
    %v410 = vsel %vm405, %v83, 0
    %v413 = vsel %vm405, %v84, 0
    %v416 = vsel %vm405, %v85, 0
    %vm418 = vcmask 1043456
    %v420 = vsel %vm418, %v403, 0
    %v423 = vsel %vm418, %v404, 0
    %425 = vmatprep.subr.bf16.mxu0 %v423
    %426 = vmatpush1.bf16.msra.mxu0 %v420
    %427 = vmatprep.subr.bf16.mxu0 0
    %428 = vmatpush1.bf16.msra.mxu0 0
    %429 = vmatprep.subr.bf16.mxu0 0
    %430 = vmatpush1.bf16.msra.mxu0 0
    %431 = vmatprep.subr.bf16.mxu0 0
    %432 = vmatpush1.bf16.msra.mxu0 0
    %433 = vmatprep.subr.bf16.mxu0 0
    %434 = vmatpush1.bf16.msra.mxu0 0
    %435 = vmatprep.subr.bf16.mxu0 0
    %436 = vmatpush1.bf16.msra.mxu0 0
    %437 = vmatprep.subr.bf16.mxu0 0
    %438 = vmatpush1.bf16.msra.mxu0 0
    %439 = vmatprep.subr.bf16.mxu0 0
    %440 = vmatpush1.bf16.msra.mxu0 0
    %441 = vmatprep.subr.bf16.mxu0 0
    %442 = vmatpush1.bf16.msra.mxu0 0
    %443 = vmatprep.subr.bf16.mxu0 0
    %444 = vmatpush1.bf16.msra.mxu0 0
    %445 = vmatprep.subr.bf16.mxu0 0
    %446 = vmatpush1.bf16.msra.mxu0 0
    %447 = vmatprep.subr.bf16.mxu0 0
    %448 = vmatpush1.bf16.msra.mxu0 0
    %449 = vmatprep.subr.bf16.mxu0 0
    %450 = vmatpush1.bf16.msra.mxu0 0
    %451 = vmatprep.subr.bf16.mxu0 0
    %452 = vmatpush1.bf16.msra.mxu0 0
    %453 = vmatprep.subr.bf16.mxu0 0
    %454 = vmatpush1.bf16.msra.mxu0 0
    %455 = vmatprep.subr.bf16.mxu0 0
    %456 = vmatpush1.bf16.msra.mxu0 0
    %457 = vmatprep.mubr.bf16.mxu0 0
    %458 = vmatmul.mubr.bf16.gmra.mrb[0].mxu0 %v407
    %v459 = vpop.f32.mrb[0].mxu0
    %v460 = vadd.f32 %v362, %v459
    %v461 = vpop.f32.mrb[0].mxu0
    %v462 = vadd.f32 %v364, %v461
    %v463 = vpop.f32.mrb[0].mxu0
    %v464 = vadd.f32 %v366, %v463
    %v465 = vpop.f32.mrb[0].mxu0
    %v466 = vadd.f32 %v368, %v465
    %467 = vmatprep.mubr.bf16.mxu0 0
    %468 = vmatmul.mubr.bf16.gmra.mrb[0].mxu0 %v410
    %v469 = vpop.f32.mrb[0].mxu0
    %v470 = vadd.f32 %v372, %v469
    %v471 = vpop.f32.mrb[0].mxu0
    %v472 = vadd.f32 %v374, %v471
    %v473 = vpop.f32.mrb[0].mxu0
    %v474 = vadd.f32 %v376, %v473
    %v475 = vpop.f32.mrb[0].mxu0
    %v476 = vadd.f32 %v378, %v475
    %477 = vmatprep.mubr.bf16.mxu0 0
    %478 = vmatmul.mubr.bf16.gmra.mrb[0].mxu0 %v413
    %v479 = vpop.f32.mrb[0].mxu0
    %v480 = vadd.f32 %v382, %v479
    %v481 = vpop.f32.mrb[0].mxu0
    %v482 = vadd.f32 %v384, %v481
    %v483 = vpop.f32.mrb[0].mxu0
    %v484 = vadd.f32 %v386, %v483
    %v485 = vpop.f32.mrb[0].mxu0
    %v486 = vadd.f32 %v388, %v485
    %487 = vmatprep.mubr.bf16.mxu0 0
    %488 = vmatmul.mubr.bf16.gmra.mrb[0].mxu0 %v416
    %v489 = vpop.f32.mrb[0].mxu0
    %v490 = vadd.f32 %v392, %v489
    %v491 = vpop.f32.mrb[0].mxu0
    %v492 = vadd.f32 %v394, %v491
    %v493 = vpop.f32.mrb[0].mxu0
    %v494 = vadd.f32 %v396, %v493
    %v495 = vpop.f32.mrb[0].mxu0
    %v496 = vadd.f32 %v398, %v495
    %497 = vdwg.mxu0
    %v498 = vld [vmem:[%s4] sm:$0x3]
    %v500 = vlaneseq
    %v501 = vshrl.u32 %v500, 7
    %v502 = vsub.s32 0, %v501
    %v503 = vrot.slane %v498, %v502
    %v504 = vlaneseq
    %v505 = vshrl.u32 %v504, 7
    %v506 = vsub.s32 1, %v505
    %v507 = vrot.slane %v498, %v506
    %v510 = vadd.f32 %v460, %v503
    %v511 = vadd.f32 %v462, %v507
    %v512 = vadd.f32 %v464, %v503
    %v513 = vadd.f32 %v466, %v507
    %v514 = vadd.f32 %v470, %v503
    %v515 = vadd.f32 %v472, %v507
    %v516 = vadd.f32 %v474, %v503
    %v517 = vadd.f32 %v476, %v507
    %v518 = vadd.f32 %v480, %v503
    %v519 = vadd.f32 %v482, %v507
    %v520 = vadd.f32 %v484, %v503
    %v521 = vadd.f32 %v486, %v507
    %v522 = vadd.f32 %v490, %v503
    %v523 = vadd.f32 %v492, %v507
    %v524 = vadd.f32 %v494, %v503
    %v525 = vadd.f32 %v496, %v507
    %v526 = vmax.f32 %v510, 0.0
    %v527 = vmax.f32 %v511, 0.0
    %v528 = vmax.f32 %v512, 0.0
    %v529 = vmax.f32 %v513, 0.0
    %v530 = vmax.f32 %v514, 0.0
    %v531 = vmax.f32 %v515, 0.0
    %v532 = vmax.f32 %v516, 0.0
    %v533 = vmax.f32 %v517, 0.0
    %v534 = vmax.f32 %v518, 0.0
    %v535 = vmax.f32 %v519, 0.0
    %v536 = vmax.f32 %v520, 0.0
    %v537 = vmax.f32 %v521, 0.0
    %v538 = vmax.f32 %v522, 0.0
    %v539 = vmax.f32 %v523, 0.0
    %v540 = vmax.f32 %v524, 0.0
    %v541 = vmax.f32 %v525, 0.0
    %v542 = vpack.c.bf16 %v528, %v526
    %v543 = vpack.c.bf16 %v529, %v527
    %v544 = vpack.c.bf16 %v532, %v530
    %v545 = vpack.c.bf16 %v533, %v531
    %v546 = vpack.c.bf16 %v536, %v534
    %v547 = vpack.c.bf16 %v537, %v535
    %v548 = vpack.c.bf16 %v540, %v538
    %v549 = vpack.c.bf16 %v541, %v539
    %v550 = vld [vmem:[#allocation4] sm:$0xff]
    %v551 = vld [vmem:[#allocation4 + $0x8] sm:$0xff]
    %v552 = vld [vmem:[#allocation4 + $0x10] sm:$0xff]
    %v553 = vld [vmem:[#allocation4 + $0x18] sm:$0xff]
    %v554 = vld [vmem:[#allocation4 + $0x20] sm:$0xff]
    %v555 = vld [vmem:[#allocation4 + $0x28] sm:$0xff]
    %v556 = vld [vmem:[#allocation4 + $0x30] sm:$0xff]
    %v557 = vld [vmem:[#allocation4 + $0x38] sm:$0xff]
    %v558 = vld [vmem:[#allocation4 + $0x40] sm:$0xff]
    %v559 = vld [vmem:[#allocation4 + $0x48] sm:$0xff]
    %v560 = vld [vmem:[#allocation4 + $0x50] sm:$0xff]
    %v561 = vld [vmem:[#allocation4 + $0x58] sm:$0xff]
    %v562 = vld [vmem:[#allocation4 + $0x60] sm:$0xff]
    %v563 = vld [vmem:[#allocation4 + $0x68] sm:$0xff]
    %v564 = vld [vmem:[#allocation4 + $0x70] sm:$0xff]
    %v565 = vld [vmem:[#allocation4 + $0x78] sm:$0xff]
    %v566 = vld [vmem:[#allocation4 + $0x80] sm:$0xff]
    %v567 = vld [vmem:[#allocation4 + $0x88] sm:$0xff]
    %v568 = vld [vmem:[#allocation4 + $0x90] sm:$0xff]
    %v569 = vld [vmem:[#allocation4 + $0x98] sm:$0xff]
    %v570 = vld [vmem:[#allocation4 + $0xa0] sm:$0xff]
    %v571 = vld [vmem:[#allocation4 + $0xa8] sm:$0xff]
    %v572 = vld [vmem:[#allocation4 + $0xb0] sm:$0xff]
    %v573 = vld [vmem:[#allocation4 + $0xb8] sm:$0xff]
    %v574 = vld [vmem:[#allocation4 + $0xc0] sm:$0xff]
    %v575 = vld [vmem:[#allocation4 + $0xc8] sm:$0xff]
    %v576 = vld [vmem:[#allocation4 + $0xd0] sm:$0xff]
    %v577 = vld [vmem:[#allocation4 + $0xd8] sm:$0xff]
    %v578 = vld [vmem:[#allocation4 + $0xe0] sm:$0xff]
    %v579 = vld [vmem:[#allocation4 + $0xe8] sm:$0xff]
    %v580 = vld [vmem:[#allocation4 + $0xf0] sm:$0xff]
    %v581 = vld [vmem:[#allocation4 + $0xf8] sm:$0xff]
    %v582 = vld [vmem:[%s6] sm:$0x3]
    %v584 = vlaneseq
    %v585 = vshrl.u32 %v584, 7
    %v586 = vsub.s32 0, %v585
    %v587 = vrot.slane %v582, %v586
    %v588 = vlaneseq
    %v589 = vshrl.u32 %v588, 7
    %v590 = vsub.s32 1, %v589
    %v591 = vrot.slane %v582, %v590
    %v626 = vunpack.c.l.b16 %v550
    %v627 = vunpack.c.h.b16 %v550
    %v628 = vunpack.c.l.b16 %v551
    %v629 = vunpack.c.h.b16 %v551
    %v630 = vunpack.c.l.b16 %v552
    %v631 = vunpack.c.h.b16 %v552
    %v632 = vunpack.c.l.b16 %v553
    %v633 = vunpack.c.h.b16 %v553
    %v634 = vunpack.c.l.b16 %v554
    %v635 = vunpack.c.h.b16 %v554
    %v636 = vunpack.c.l.b16 %v555
    %v637 = vunpack.c.h.b16 %v555
    %v638 = vunpack.c.l.b16 %v556
    %v639 = vunpack.c.h.b16 %v556
    %v640 = vunpack.c.l.b16 %v557
    %v641 = vunpack.c.h.b16 %v557
    %v642 = vunpack.c.l.b16 %v558
    %v643 = vunpack.c.h.b16 %v558
    %v644 = vunpack.c.l.b16 %v559
    %v645 = vunpack.c.h.b16 %v559
    %v646 = vunpack.c.l.b16 %v560
    %v647 = vunpack.c.h.b16 %v560
    %v648 = vunpack.c.l.b16 %v561
    %v649 = vunpack.c.h.b16 %v561
    %v650 = vunpack.c.l.b16 %v562
    %v651 = vunpack.c.h.b16 %v562
    %v652 = vunpack.c.l.b16 %v563
    %v653 = vunpack.c.h.b16 %v563
    %v654 = vunpack.c.l.b16 %v564
    %v655 = vunpack.c.h.b16 %v564
    %v656 = vunpack.c.l.b16 %v565
    %v657 = vunpack.c.h.b16 %v565
    %v658 = vunpack.c.l.b16 %v566
    %v659 = vunpack.c.h.b16 %v566
    %v660 = vunpack.c.l.b16 %v567
    %v661 = vunpack.c.h.b16 %v567
    %v662 = vunpack.c.l.b16 %v568
    %v663 = vunpack.c.h.b16 %v568
    %v664 = vunpack.c.l.b16 %v569
    %v665 = vunpack.c.h.b16 %v569
    %v666 = vunpack.c.l.b16 %v570
    %v667 = vunpack.c.h.b16 %v570
    %v668 = vunpack.c.l.b16 %v571
    %v669 = vunpack.c.h.b16 %v571
    %v670 = vunpack.c.l.b16 %v572
    %v671 = vunpack.c.h.b16 %v572
    %v672 = vunpack.c.l.b16 %v573
    %v673 = vunpack.c.h.b16 %v573
    %v674 = vunpack.c.l.b16 %v574
    %v675 = vunpack.c.h.b16 %v574
    %v676 = vunpack.c.l.b16 %v575
    %v677 = vunpack.c.h.b16 %v575
    %v678 = vunpack.c.l.b16 %v576
    %v679 = vunpack.c.h.b16 %v576
    %v680 = vunpack.c.l.b16 %v577
    %v681 = vunpack.c.h.b16 %v577
    %v682 = vunpack.c.l.b16 %v578
    %v683 = vunpack.c.h.b16 %v578
    %v684 = vunpack.c.l.b16 %v579
    %v685 = vunpack.c.h.b16 %v579
    %v686 = vunpack.c.l.b16 %v580
    %v687 = vunpack.c.h.b16 %v580
    %v688 = vunpack.c.l.b16 %v581
    %v689 = vunpack.c.h.b16 %v581
    %v690 = vpack.c.b16 %v628, %v626
    %v691 = vpack.c.b16 %v629, %v627
    %v692 = vpack.c.b16 %v632, %v630
    %v693 = vpack.c.b16 %v633, %v631
    %v694 = vpack.c.b16 %v636, %v634
    %v695 = vpack.c.b16 %v637, %v635
    %v696 = vpack.c.b16 %v640, %v638
    %v697 = vpack.c.b16 %v641, %v639
    %v698 = vpack.c.b16 %v644, %v642
    %v699 = vpack.c.b16 %v645, %v643
    %v700 = vpack.c.b16 %v648, %v646
    %v701 = vpack.c.b16 %v649, %v647
    %v702 = vpack.c.b16 %v652, %v650
    %v703 = vpack.c.b16 %v653, %v651
    %v704 = vpack.c.b16 %v656, %v654
    %v705 = vpack.c.b16 %v657, %v655
    %v706 = vpack.c.b16 %v660, %v658
    %v707 = vpack.c.b16 %v661, %v659
    %v708 = vpack.c.b16 %v664, %v662
    %v709 = vpack.c.b16 %v665, %v663
    %v710 = vpack.c.b16 %v668, %v666
    %v711 = vpack.c.b16 %v669, %v667
    %v712 = vpack.c.b16 %v672, %v670
    %v713 = vpack.c.b16 %v673, %v671
    %v714 = vpack.c.b16 %v676, %v674
    %v715 = vpack.c.b16 %v677, %v675
    %v716 = vpack.c.b16 %v680, %v678
    %v717 = vpack.c.b16 %v681, %v679
    %v718 = vpack.c.b16 %v684, %v682
    %v719 = vpack.c.b16 %v685, %v683
    %v720 = vpack.c.b16 %v688, %v686
    %v721 = vpack.c.b16 %v689, %v687
    %754 = vmatprep.subr.bf16.mxu0 %v691
    %755 = vmatpush1.bf16.msra.mxu0 %v690
    %756 = vmatprep.subr.bf16.mxu0 %v693
    %757 = vmatpush1.bf16.msra.mxu0 %v692
    %758 = vmatprep.subr.bf16.mxu0 %v695
    %759 = vmatpush1.bf16.msra.mxu0 %v694
    %760 = vmatprep.subr.bf16.mxu0 %v697
    %761 = vmatpush1.bf16.msra.mxu0 %v696
    %762 = vmatprep.subr.bf16.mxu0 %v699
    %763 = vmatpush1.bf16.msra.mxu0 %v698
    %764 = vmatprep.subr.bf16.mxu0 %v701
    %765 = vmatpush1.bf16.msra.mxu0 %v700
    %766 = vmatprep.subr.bf16.mxu0 %v703
    %767 = vmatpush1.bf16.msra.mxu0 %v702
    %768 = vmatprep.subr.bf16.mxu0 %v705
    %769 = vmatpush1.bf16.msra.mxu0 %v704
    %770 = vmatprep.subr.bf16.mxu0 %v707
    %771 = vmatpush1.bf16.msra.mxu0 %v706
    %772 = vmatprep.subr.bf16.mxu0 %v709
    %773 = vmatpush1.bf16.msra.mxu0 %v708
    %774 = vmatprep.subr.bf16.mxu0 %v711
    %775 = vmatpush1.bf16.msra.mxu0 %v710
    %776 = vmatprep.subr.bf16.mxu0 %v713
    %777 = vmatpush1.bf16.msra.mxu0 %v712
    %778 = vmatprep.subr.bf16.mxu0 %v715
    %779 = vmatpush1.bf16.msra.mxu0 %v714
    %780 = vmatprep.subr.bf16.mxu0 %v717
    %781 = vmatpush1.bf16.msra.mxu0 %v716
    %782 = vmatprep.subr.bf16.mxu0 %v719
    %783 = vmatpush1.bf16.msra.mxu0 %v718
    %784 = vmatprep.subr.bf16.mxu0 %v721
    %785 = vmatpush1.bf16.msra.mxu0 %v720
    %786 = vmatprep.mubr.bf16.mxu0 %v543
    %787 = vmatmul.mubr.bf16.gmra.mrb[0].mxu0 %v542
    %v788 = vpop.f32.mrb[0].mxu0
    %v789 = vadd.f32 %v587, %v788
    %v790 = vpop.f32.mrb[0].mxu0
    %v791 = vadd.f32 %v591, %v790
    %v792 = vpop.f32.mrb[0].mxu0
    %v793 = vadd.f32 %v587, %v792
    %v794 = vpop.f32.mrb[0].mxu0
    %v795 = vadd.f32 %v591, %v794
    %796 = vmatprep.mubr.bf16.mxu0 %v545
    %797 = vmatmul.mubr.bf16.gmra.mrb[0].mxu0 %v544
    %v798 = vpop.f32.mrb[0].mxu0
    %v799 = vadd.f32 %v587, %v798
    %v800 = vpop.f32.mrb[0].mxu0
    %v801 = vadd.f32 %v591, %v800
    %v802 = vpop.f32.mrb[0].mxu0
    %v803 = vadd.f32 %v587, %v802
    %v804 = vpop.f32.mrb[0].mxu0
    %v805 = vadd.f32 %v591, %v804
    %806 = vmatprep.mubr.bf16.mxu0 %v547
    %807 = vmatmul.mubr.bf16.gmra.mrb[0].mxu0 %v546
    %v808 = vpop.f32.mrb[0].mxu0
    %v809 = vadd.f32 %v587, %v808
    %v810 = vpop.f32.mrb[0].mxu0
    %v811 = vadd.f32 %v591, %v810
    %v812 = vpop.f32.mrb[0].mxu0
    %v813 = vadd.f32 %v587, %v812
    %v814 = vpop.f32.mrb[0].mxu0
    %v815 = vadd.f32 %v591, %v814
    %816 = vmatprep.mubr.bf16.mxu0 %v549
    %817 = vmatmul.mubr.bf16.gmra.mrb[0].mxu0 %v548
    %v818 = vpop.f32.mrb[0].mxu0
    %v819 = vadd.f32 %v587, %v818
    %v820 = vpop.f32.mrb[0].mxu0
    %v821 = vadd.f32 %v591, %v820
    %v822 = vpop.f32.mrb[0].mxu0
    %v823 = vadd.f32 %v587, %v822
    %v824 = vpop.f32.mrb[0].mxu0
    %v825 = vadd.f32 %v591, %v824
    %826 = vdwg.mxu0
    %v827 = vmax.f32 %v789, 0.0
    %v828 = vmax.f32 %v791, 0.0
    %v829 = vmax.f32 %v793, 0.0
    %v830 = vmax.f32 %v795, 0.0
    %v831 = vmax.f32 %v799, 0.0
    %v832 = vmax.f32 %v801, 0.0
    %v833 = vmax.f32 %v803, 0.0
    %v834 = vmax.f32 %v805, 0.0
    %v835 = vmax.f32 %v809, 0.0
    %v836 = vmax.f32 %v811, 0.0
    %v837 = vmax.f32 %v813, 0.0
    %v838 = vmax.f32 %v815, 0.0
    %v839 = vmax.f32 %v819, 0.0
    %v840 = vmax.f32 %v821, 0.0
    %v841 = vmax.f32 %v823, 0.0
    %v842 = vmax.f32 %v825, 0.0
    %v843 = vpack.c.bf16 %v829, %v827
    %v844 = vpack.c.bf16 %v830, %v828
    %v845 = vpack.c.bf16 %v833, %v831
    %v846 = vpack.c.bf16 %v834, %v832
    %v847 = vpack.c.bf16 %v837, %v835
    %v848 = vpack.c.bf16 %v838, %v836
    %v849 = vpack.c.bf16 %v841, %v839
    %v850 = vpack.c.bf16 %v842, %v840
    %v851 = vld [vmem:[#allocation6] sm:$0xf]
    %v852 = vld [vmem:[#allocation6 + $0x4] sm:$0xf]
    %v853 = vld [vmem:[#allocation6 + $0x8] sm:$0xf]
    %v854 = vld [vmem:[#allocation6 + $0xc] sm:$0xf]
    %v855 = vld [vmem:[#allocation6 + $0x10] sm:$0xf]
    %v856 = vld [vmem:[#allocation6 + $0x14] sm:$0xf]
    %v857 = vld [vmem:[#allocation6 + $0x18] sm:$0xf]
    %v858 = vld [vmem:[#allocation6 + $0x1c] sm:$0xf]
    %v859 = vld [vmem:[#allocation6 + $0x20] sm:$0xf]
    %v860 = vld [vmem:[#allocation6 + $0x24] sm:$0xf]
    %v861 = vld [vmem:[#allocation6 + $0x28] sm:$0xf]
    %v862 = vld [vmem:[#allocation6 + $0x2c] sm:$0xf]
    %v863 = vld [vmem:[#allocation6 + $0x30] sm:$0xf]
    %v864 = vld [vmem:[#allocation6 + $0x34] sm:$0xf]
    %v865 = vld [vmem:[#allocation6 + $0x38] sm:$0xf]
    %v866 = vld [vmem:[#allocation6 + $0x3c] sm:$0xf]
    %v867 = vld [vmem:[#allocation6 + $0x40] sm:$0xf]
    %v868 = vld [vmem:[#allocation6 + $0x44] sm:$0xf]
    %v869 = vld [vmem:[#allocation6 + $0x48] sm:$0xf]
    %v870 = vld [vmem:[#allocation6 + $0x4c] sm:$0xf]
    %v871 = vld [vmem:[#allocation6 + $0x50] sm:$0xf]
    %v872 = vld [vmem:[#allocation6 + $0x54] sm:$0xf]
    %v873 = vld [vmem:[#allocation6 + $0x58] sm:$0xf]
    %v874 = vld [vmem:[#allocation6 + $0x5c] sm:$0xf]
    %v875 = vld [vmem:[#allocation6 + $0x60] sm:$0xf]
    %v876 = vld [vmem:[#allocation6 + $0x64] sm:$0xf]
    %v877 = vld [vmem:[#allocation6 + $0x68] sm:$0xf]
    %v878 = vld [vmem:[#allocation6 + $0x6c] sm:$0xf]
    %v879 = vld [vmem:[#allocation6 + $0x70] sm:$0xf]
    %v880 = vld [vmem:[#allocation6 + $0x74] sm:$0xf]
    %v881 = vld [vmem:[#allocation6 + $0x78] sm:$0xf]
    %v882 = vld [vmem:[#allocation6 + $0x7c] sm:$0xf]
    %v883 = vld [vmem:[%s8] sm:$0x1]
    %v885 = vlaneseq
    %v886 = vshrl.u32 %v885, 7
    %v887 = vsub.s32 0, %v886
    %v888 = vrot.slane %v883, %v887
    %v922 = vunpack.c.l.b16 %v851
    %v923 = vunpack.c.l.b16 %v852
    %v924 = vunpack.c.l.b16 %v853
    %v925 = vunpack.c.l.b16 %v854
    %v926 = vunpack.c.l.b16 %v855
    %v927 = vunpack.c.l.b16 %v856
    %v928 = vunpack.c.l.b16 %v857
    %v929 = vunpack.c.l.b16 %v858
    %v930 = vunpack.c.l.b16 %v859
    %v931 = vunpack.c.l.b16 %v860
    %v932 = vunpack.c.l.b16 %v861
    %v933 = vunpack.c.l.b16 %v862
    %v934 = vunpack.c.l.b16 %v863
    %v935 = vunpack.c.l.b16 %v864
    %v936 = vunpack.c.l.b16 %v865
    %v937 = vunpack.c.l.b16 %v866
    %v938 = vunpack.c.l.b16 %v867
    %v939 = vunpack.c.l.b16 %v868
    %v940 = vunpack.c.l.b16 %v869
    %v941 = vunpack.c.l.b16 %v870
    %v942 = vunpack.c.l.b16 %v871
    %v943 = vunpack.c.l.b16 %v872
    %v944 = vunpack.c.l.b16 %v873
    %v945 = vunpack.c.l.b16 %v874
    %v946 = vunpack.c.l.b16 %v875
    %v947 = vunpack.c.l.b16 %v876
    %v948 = vunpack.c.l.b16 %v877
    %v949 = vunpack.c.l.b16 %v878
    %v950 = vunpack.c.l.b16 %v879
    %v951 = vunpack.c.l.b16 %v880
    %v952 = vunpack.c.l.b16 %v881
    %v953 = vunpack.c.l.b16 %v882
    %v954 = vpack.c.b16 %v923, %v922
    %v955 = vpack.c.b16 %v925, %v924
    %v956 = vpack.c.b16 %v927, %v926
    %v957 = vpack.c.b16 %v929, %v928
    %v958 = vpack.c.b16 %v931, %v930
    %v959 = vpack.c.b16 %v933, %v932
    %v960 = vpack.c.b16 %v935, %v934
    %v961 = vpack.c.b16 %v937, %v936
    %v962 = vpack.c.b16 %v939, %v938
    %v963 = vpack.c.b16 %v941, %v940
    %v964 = vpack.c.b16 %v943, %v942
    %v965 = vpack.c.b16 %v945, %v944
    %v966 = vpack.c.b16 %v947, %v946
    %v967 = vpack.c.b16 %v949, %v948
    %v968 = vpack.c.b16 %v951, %v950
    %v969 = vpack.c.b16 %v953, %v952
    %986 = vmatprep.subr.bf16.mxu0 0
    %987 = vmatpush1.bf16.msra.mxu0 %v954
    %988 = vmatprep.subr.bf16.mxu0 0
    %989 = vmatpush1.bf16.msra.mxu0 %v955
    %990 = vmatprep.subr.bf16.mxu0 0
    %991 = vmatpush1.bf16.msra.mxu0 %v956
    %992 = vmatprep.subr.bf16.mxu0 0
    %993 = vmatpush1.bf16.msra.mxu0 %v957
    %994 = vmatprep.subr.bf16.mxu0 0
    %995 = vmatpush1.bf16.msra.mxu0 %v958
    %996 = vmatprep.subr.bf16.mxu0 0
    %997 = vmatpush1.bf16.msra.mxu0 %v959
    %998 = vmatprep.subr.bf16.mxu0 0
    %999 = vmatpush1.bf16.msra.mxu0 %v960
    %1000 = vmatprep.subr.bf16.mxu0 0
    %1001 = vmatpush1.bf16.msra.mxu0 %v961
    %1002 = vmatprep.subr.bf16.mxu0 0
    %1003 = vmatpush1.bf16.msra.mxu0 %v962
    %1004 = vmatprep.subr.bf16.mxu0 0
    %1005 = vmatpush1.bf16.msra.mxu0 %v963
    %1006 = vmatprep.subr.bf16.mxu0 0
    %1007 = vmatpush1.bf16.msra.mxu0 %v964
    %1008 = vmatprep.subr.bf16.mxu0 0
    %1009 = vmatpush1.bf16.msra.mxu0 %v965
    %1010 = vmatprep.subr.bf16.mxu0 0
    %1011 = vmatpush1.bf16.msra.mxu0 %v966
    %1012 = vmatprep.subr.bf16.mxu0 0
    %1013 = vmatpush1.bf16.msra.mxu0 %v967
    %1014 = vmatprep.subr.bf16.mxu0 0
    %1015 = vmatpush1.bf16.msra.mxu0 %v968
    %1016 = vmatprep.subr.bf16.mxu0 0
    %1017 = vmatpush1.bf16.msra.mxu0 %v969
    %1018 = vmatprep.mubr.bf16.mxu0 %v844
    %1019 = vmatmul.mubr.bf16.gmra.mrb[0].mxu0 %v843
    %v1020 = vpop.f32.mrb[0].mxu0
    %v1021 = vadd.f32 %v888, %v1020
    %v1022 = vpop.f32.mrb[0].mxu0
    %v1023 = vpop.f32.mrb[0].mxu0
    %v1024 = vadd.f32 %v888, %v1023
    %v1025 = vpop.f32.mrb[0].mxu0
    %1026 = vmatprep.mubr.bf16.mxu0 %v846
    %1027 = vmatmul.mubr.bf16.gmra.mrb[0].mxu0 %v845
    %v1028 = vpop.f32.mrb[0].mxu0
    %v1029 = vadd.f32 %v888, %v1028
    %v1030 = vpop.f32.mrb[0].mxu0
    %v1031 = vpop.f32.mrb[0].mxu0
    %v1032 = vadd.f32 %v888, %v1031
    %v1033 = vpop.f32.mrb[0].mxu0
    %1034 = vmatprep.mubr.bf16.mxu0 %v848
    %1035 = vmatmul.mubr.bf16.gmra.mrb[0].mxu0 %v847
    %v1036 = vpop.f32.mrb[0].mxu0
    %v1037 = vadd.f32 %v888, %v1036
    %v1038 = vpop.f32.mrb[0].mxu0
    %v1039 = vpop.f32.mrb[0].mxu0
    %v1040 = vadd.f32 %v888, %v1039
    %v1041 = vpop.f32.mrb[0].mxu0
    %1042 = vmatprep.mubr.bf16.mxu0 %v850
    %1043 = vmatmul.mubr.bf16.gmra.mrb[0].mxu0 %v849
    %v1044 = vpop.f32.mrb[0].mxu0
    %v1045 = vadd.f32 %v888, %v1044
    %v1046 = vpop.f32.mrb[0].mxu0
    %v1047 = vpop.f32.mrb[0].mxu0
    %v1048 = vadd.f32 %v888, %v1047
    %v1049 = vpop.f32.mrb[0].mxu0
    %1050 = vdwg.mxu0
    %vm1051 = vcmask 31744
    %1052 = vst.msk [vmem:[%s9] sm:$0xff] %vm1051, %v74
    %1053 = vst.msk [vmem:[%s9 + $0x8] sm:$0xff] %vm1051, %v75
    %1054 = vst.msk [vmem:[%s9 + $0x10] sm:$0xff] %vm1051, %v76
    %1055 = vst.msk [vmem:[%s9 + $0x18] sm:$0xff] %vm1051, %v77
    %1056 = vst.msk [vmem:[%s9 + $0x20] sm:$0xff] %vm1051, %v78
    %1057 = vst.msk [vmem:[%s9 + $0x28] sm:$0xff] %vm1051, %v79
    %1058 = vst.msk [vmem:[%s9 + $0x30] sm:$0xff] %vm1051, %v80
    %1059 = vst.msk [vmem:[%s9 + $0x38] sm:$0xff] %vm1051, %v81
    %v1060 = vmul.f32 %v1021, 1.442695
    %v1061 = vpow.pop %v1060
    %v1062 = vmul.f32 %v1024, 1.442695
    %v1063 = vpow.pop %v1062
    %v1064 = vmul.f32 %v1029, 1.442695
    %v1065 = vpow.pop %v1064
    %v1066 = vmul.f32 %v1032, 1.442695
    %v1067 = vpow.pop %v1066
    %v1068 = vmul.f32 %v1037, 1.442695
    %v1069 = vpow.pop %v1068
    %v1070 = vmul.f32 %v1040, 1.442695
    %v1071 = vpow.pop %v1070
    %v1072 = vmul.f32 %v1045, 1.442695
    %v1073 = vpow.pop %v1072
    %v1074 = vmul.f32 %v1048, 1.442695
    %v1075 = vpow.pop %v1074
    %1084 = vrot.lane.b32.xlu0 %v1061, 4
    %v1085 = vpop.permute.xlu0 %1084
    %1086 = vrot.lane.b32.xlu0 %v1063, 4
    %v1087 = vpop.permute.xlu0 %1086
    %1088 = vrot.lane.b32.xlu0 %v1065, 4
    %v1089 = vpop.permute.xlu0 %1088
    %1090 = vrot.lane.b32.xlu0 %v1067, 4
    %v1091 = vpop.permute.xlu0 %1090
    %1092 = vrot.lane.b32.xlu0 %v1069, 4
    %v1093 = vpop.permute.xlu0 %1092
    %1094 = vrot.lane.b32.xlu0 %v1071, 4
    %v1095 = vpop.permute.xlu0 %1094
    %1096 = vrot.lane.b32.xlu0 %v1073, 4
    %v1097 = vpop.permute.xlu0 %1096
    %1098 = vrot.lane.b32.xlu0 %v1075, 4
    %v1099 = vpop.permute.xlu0 %1098
    %v1108 = vmul.f32 %v74, %v1085
    %v1109 = vmul.f32 %v75, %v1087
    %v1110 = vmul.f32 %v76, %v1089
    %v1111 = vmul.f32 %v77, %v1091
    %v1112 = vmul.f32 %v78, %v1093
    %v1113 = vmul.f32 %v79, %v1095
    %v1114 = vmul.f32 %v80, %v1097
    %v1115 = vmul.f32 %v81, %v1099
    %v1116 = vadd.f32 %v1108, %v1021
    %v1117 = vadd.f32 %v1109, %v1024
    %v1118 = vadd.f32 %v1110, %v1029
    %v1119 = vadd.f32 %v1111, %v1032
    %v1120 = vadd.f32 %v1112, %v1037
    %v1121 = vadd.f32 %v1113, %v1040
    %v1122 = vadd.f32 %v1114, %v1045
    %v1123 = vadd.f32 %v1115, %v1048
    %vm1124 = vcmask 64544
    %1125 = vst.msk [vmem:[%s9] sm:$0xff] %vm1124, %v1116
    %1126 = vst.msk [vmem:[%s9 + $0x8] sm:$0xff] %vm1124, %v1117
    %1127 = vst.msk [vmem:[%s9 + $0x10] sm:$0xff] %vm1124, %v1118
    %1128 = vst.msk [vmem:[%s9 + $0x18] sm:$0xff] %vm1124, %v1119
    %1129 = vst.msk [vmem:[%s9 + $0x20] sm:$0xff] %vm1124, %v1120
    %1130 = vst.msk [vmem:[%s9 + $0x28] sm:$0xff] %vm1124, %v1121
    %1131 = vst.msk [vmem:[%s9 + $0x30] sm:$0xff] %vm1124, %v1122
    %1132 = vst.msk [vmem:[%s9 + $0x38] sm:$0xff] %vm1124, %v1123
    // Predicated region
    $region50: #{tpu_custom_call.1} parent=1 // pred_check
      _
    $region51: #{tpu_custom_call.1} parent=1 // pred_check_branch
      %1134 = sbr.rel (0) target = $region53
    $region52: #{tpu_custom_call.1} parent=1 // pred_region
      _
    $region53: #{tpu_custom_call.1} parent=1 // pred_fallthru
      _
    // Predicated region
    $region54: #{tpu_custom_call.1} parent=1 // pred_check
      _
    $region55: #{tpu_custom_call.1} parent=1 // pred_check_branch
      %1136 = sbr.rel (0) target = $region57
    $region56: #{tpu_custom_call.1} parent=1 // pred_region
      _
    $region57: #{tpu_custom_call.1} parent=1 // pred_fallthru
      _
    %1137 = vsyncpa [#allocation3], 1
    %1138 = vsyncpa [#allocation5], 1

</llo_original>
